<compile_context>
chip_gen: v6e
topology: v6e:2x2x1
jax: 0.10.0
libtpu: 0.0.40
codegen_flags: <defaults>
</compile_context>

<pallas_src>
import jax
import jax.numpy as jnp
from jax.experimental import pallas as pl
from jax.experimental.pallas import tpu as pltpu


def _masked_l1_kernel(x_ref, t_ref, m_ref, o_ref, acc_ref):
    # x_ref, t_ref: (1, C, TILE_HW); m_ref: (1, 1, TILE_HW)
    # o_ref: (1, 1, 1) per-shard partial sum; acc_ref: (1, C, TILE_HW) f32
    n = pl.program_id(1)
    h = pl.program_id(2)
    last_n = pl.num_programs(1) - 1
    last_h = pl.num_programs(2) - 1

    @pl.when((n == 0) & (h == 0))
    def _():
        acc_ref[...] = jnp.zeros_like(acc_ref)

    x = x_ref[...]
    t = t_ref[...]
    m = m_ref[...].astype(x.dtype)              # broadcasts over channel axis
    diff = jnp.abs((x - t) * m)                 # == |x*m - t*m| for any mask
    acc_ref[...] += diff.astype(jnp.float32)    # pure element-wise VPU adds

    @pl.when((n == last_n) & (h == last_h))
    def _():
        # single cross-lane/sublane reduction per shard
        total = jnp.sum(acc_ref[...])
        o_ref[...] = jnp.full((1, 1, 1), total, dtype=o_ref.dtype)


def _pick_tile_hw(hw, c, itemsize, budget_bytes=8 * 1024 * 1024):
    """Largest multiple-of-128 divisor of hw whose double-buffered tiles fit."""
    if hw % 128 != 0:
        return hw  # full-extent last dim is always a legal block
    best = 128
    for t in range(128, hw + 1, 128):
        if hw % t:
            continue
        # x + target (double-buffered) + mask (double-buffered) + f32 acc
        need = 2 * (2 * c * t * itemsize) + 2 * t * itemsize + c * t * 4
        if need <= budget_bytes:
            best = t
    return best


def masked_l1_loss(inp, target, mask):
    """inp, target: (N, C, H, W); mask: (N, 1, H, W). Returns scalar f32."""
    N, C, H, W = inp.shape
    assert target.shape == inp.shape
    assert mask.shape == (N, 1, H, W)
    HW = H * W

    x = inp.reshape(N, C, HW)
    t = target.reshape(N, C, HW)
    m = mask.reshape(N, 1, HW)

    tile_hw = _pick_tile_hw(HW, C, x.dtype.itemsize)
    n_hw = HW // tile_hw

    # Shard the reduction across both TensorCores on v7x (parallel axis);
    # it is just a serial outer loop on 1-TC chips (v5e/v6e).
    G = 2 if (N >= 2 and N % 2 == 0) else 1
    n_per = N // G

    cost = pl.CostEstimate(
        flops=4 * N * C * HW,
        transcendentals=0,
        bytes_accessed=x.nbytes + t.nbytes + m.nbytes + 4 * G,
    )

    partials = pl.pallas_call(
        _masked_l1_kernel,
        out_shape=jax.ShapeDtypeStruct((G, 1, 1), jnp.float32),
        grid_spec=pltpu.PrefetchScalarGridSpec(
            num_scalar_prefetch=0,
            grid=(G, n_per, n_hw),
            in_specs=[
                pl.BlockSpec((1, C, tile_hw),
                             lambda g, n, h: (g * n_per + n, 0, h)),
                pl.BlockSpec((1, C, tile_hw),
                             lambda g, n, h: (g * n_per + n, 0, h)),
                pl.BlockSpec((1, 1, tile_hw),
                             lambda g, n, h: (g * n_per + n, 0, h)),
            ],
            out_specs=pl.BlockSpec((1, 1, 1), lambda g, n, h: (g, 0, 0)),
            scratch_shapes=[pltpu.VMEM((1, C, tile_hw), jnp.float32)],
        ),
        compiler_params=pltpu.CompilerParams(
            dimension_semantics=("parallel", "arbitrary", "arbitrary"),
            vmem_limit_bytes=32 * 1024 * 1024,
        ),
        cost_estimate=cost,
    )(x, t, m)

    # mean over all N*C*H*W elements (nn.L1Loss reduction='mean')
    total = jnp.sum(partials)
    return (total / jnp.float32(N * C * HW)).astype(jnp.float32)


if __name__ == "__main__":
    key = jax.random.PRNGKey(0)
    k1, k2, k3 = jax.random.split(key, 3)

    N, C, H, W = 2, 4, 16, 16
    inp = jax.random.normal(k1, (N, C, H, W), dtype=jnp.float32)
    target = jax.random.normal(k2, (N, C, H, W), dtype=jnp.float32)
    mask = (jax.random.uniform(k3, (N, 1, H, W)) > 0.5).astype(jnp.float32)

    loss = jax.block_until_ready(masked_l1_loss(inp, target, mask))

    # reference check in plain JAX
    ref = jnp.mean(jnp.abs(inp * mask - target * mask))
    assert jnp.allclose(loss, ref, rtol=1e-5, atol=1e-6), (loss, ref)

    print("KERNEL_OK")
</pallas_src>

<mosaic_0001>
module attributes {stable_mosaic.version = 11 : i64} {
  func.func @_masked_l1_kernel(%arg0: i32, %arg1: i32, %arg2: i32, %arg3: memref<1x4x256xf32, #tpu.memory_space<vmem>>, %arg4: memref<1x4x256xf32, #tpu.memory_space<vmem>>, %arg5: memref<1x1x256xf32, #tpu.memory_space<vmem>>, %arg6: memref<1x1x1xf32, #tpu.memory_space<vmem>>, %arg7: memref<1x4x256xf32, #tpu.memory_space<vmem>>) attributes {dimension_semantics = [#tpu.dimension_semantics<parallel>, #tpu.dimension_semantics<arbitrary>, #tpu.dimension_semantics<arbitrary>], iteration_bounds = array<i64: 2, 1, 1>, scalar_prefetch = 0 : i64, scratch_operands = 1 : i64, tpu.core_type = #tpu.core_type<tc>, window_params = [{transform_indices = @transform_0, window_bounds = array<i64: 1, 4, 256>}, {transform_indices = @transform_1, window_bounds = array<i64: 1, 4, 256>}, {transform_indices = @transform_2, window_bounds = array<i64: 1, 1, 256>}, {transform_indices = @transform_3, window_bounds = array<i64: 1, 1, 1>}]} {
    %c0_i32 = arith.constant 0 : i32
    %0 = arith.cmpi eq, %arg1, %c0_i32 : i32
    %c0_i32_0 = arith.constant 0 : i32
    %1 = arith.cmpi eq, %arg2, %c0_i32_0 : i32
    %2 = arith.andi %0, %1 : i1
    %3 = arith.extui %2 : i1 to i32
    %c0_i32_1 = arith.constant 0 : i32
    %4 = arith.cmpi ne, %3, %c0_i32_1 : i32
    scf.if %4 {
      %cst = arith.constant 0.000000e+00 : f32
      %20 = vector.broadcast %cst : f32 to vector<1x4x256xf32>
      %c0_19 = arith.constant 0 : index
      %c0_20 = arith.constant 0 : index
      %c0_21 = arith.constant 0 : index
      %21 = vector.load %arg7[%c0_19, %c0_20, %c0_21] : memref<1x4x256xf32, #tpu.memory_space<vmem>>, vector<1x4x256xf32>
      tpu.vector_store %arg7[%c0_19, %c0_20, %c0_21], %20 {strides = array<i32>} : memref<1x4x256xf32, #tpu.memory_space<vmem>>, vector<1x4x256xf32>,
    } else {
    }
    %c0 = arith.constant 0 : index
    %c0_2 = arith.constant 0 : index
    %c0_3 = arith.constant 0 : index
    %5 = vector.load %arg3[%c0, %c0_2, %c0_3] : memref<1x4x256xf32, #tpu.memory_space<vmem>>, vector<1x4x256xf32>
    %c0_4 = arith.constant 0 : index
    %c0_5 = arith.constant 0 : index
    %c0_6 = arith.constant 0 : index
    %6 = vector.load %arg4[%c0_4, %c0_5, %c0_6] : memref<1x4x256xf32, #tpu.memory_space<vmem>>, vector<1x4x256xf32>
    %c0_7 = arith.constant 0 : index
    %c0_8 = arith.constant 0 : index
    %c0_9 = arith.constant 0 : index
    %7 = vector.load %arg5[%c0_7, %c0_8, %c0_9] : memref<1x1x256xf32, #tpu.memory_space<vmem>>, vector<1x1x256xf32>
    %8 = arith.subf %5, %6 : vector<1x4x256xf32>
    %9 = vector.broadcast %7 : vector<1x1x256xf32> to vector<1x4x256xf32>
    %10 = arith.mulf %8, %9 : vector<1x4x256xf32>
    %11 = math.absf %10 : vector<1x4x256xf32>
    %c0_10 = arith.constant 0 : index
    %c0_11 = arith.constant 0 : index
    %c0_12 = arith.constant 0 : index
    %12 = vector.load %arg7[%c0_10, %c0_11, %c0_12] : memref<1x4x256xf32, #tpu.memory_space<vmem>>, vector<1x4x256xf32>
    %13 = arith.addf %12, %11 : vector<1x4x256xf32>
    %c0_13 = arith.constant 0 : index
    %c0_14 = arith.constant 0 : index
    %c0_15 = arith.constant 0 : index
    %14 = vector.load %arg7[%c0_13, %c0_14, %c0_15] : memref<1x4x256xf32, #tpu.memory_space<vmem>>, vector<1x4x256xf32>
    tpu.vector_store %arg7[%c0_13, %c0_14, %c0_15], %13 {strides = array<i32>} : memref<1x4x256xf32, #tpu.memory_space<vmem>>, vector<1x4x256xf32>,
    %c0_i32_16 = arith.constant 0 : i32
    %15 = arith.cmpi eq, %arg1, %c0_i32_16 : i32
    %c0_i32_17 = arith.constant 0 : i32
    %16 = arith.cmpi eq, %arg2, %c0_i32_17 : i32
    %17 = arith.andi %15, %16 : i1
    %18 = arith.extui %17 : i1 to i32
    %c0_i32_18 = arith.constant 0 : i32
    %19 = arith.cmpi ne, %18, %c0_i32_18 : i32
    scf.if %19 {
      %c0_19 = arith.constant 0 : index
      %c0_20 = arith.constant 0 : index
      %c0_21 = arith.constant 0 : index
      %20 = vector.load %arg7[%c0_19, %c0_20, %c0_21] : memref<1x4x256xf32, #tpu.memory_space<vmem>>, vector<1x4x256xf32>
      %21 = vector.shape_cast %20 : vector<1x4x256xf32> to vector<1x1x4x256xf32>
      %cst = arith.constant dense<0.000000e+00> : vector<1xf32>
      %22 = vector.multi_reduction <add>, %21, %cst [1, 2, 3] : vector<1x1x4x256xf32> to vector<1xf32>
      %23 = vector.shape_cast %22 : vector<1xf32> to vector<1x1x1x1xf32>
      %24 = vector.extract %23[0, 0, 0, 0] : f32 from vector<1x1x1x1xf32>
      %25 = vector.broadcast %24 : f32 to vector<1x1x1xf32>
      %c0_22 = arith.constant 0 : index
      %c0_23 = arith.constant 0 : index
      %c0_24 = arith.constant 0 : index
      %26 = vector.load %arg6[%c0_22, %c0_23, %c0_24] : memref<1x1x1xf32, #tpu.memory_space<vmem>>, vector<1x1x1xf32>
      tpu.vector_store %arg6[%c0_22, %c0_23, %c0_24], %25 {strides = array<i32>} : memref<1x1x1xf32, #tpu.memory_space<vmem>>, vector<1x1x1xf32>,
    } else {
    }
    return
  }
  func.func @transform_0(%arg0: i32, %arg1: i32, %arg2: i32) -> (i32, i32, i32) {
    %c1_i32 = arith.constant 1 : i32
    %0 = arith.muli %arg0, %c1_i32 : i32
    %1 = arith.addi %0, %arg1 : i32
    %c0_i32 = arith.constant 0 : i32
    %c0_i32_0 = arith.constant 0 : i32
    return %1, %c0_i32, %arg2 : i32, i32, i32
  }
  func.func @transform_1(%arg0: i32, %arg1: i32, %arg2: i32) -> (i32, i32, i32) {
    %c1_i32 = arith.constant 1 : i32
    %0 = arith.muli %arg0, %c1_i32 : i32
    %1 = arith.addi %0, %arg1 : i32
    %c0_i32 = arith.constant 0 : i32
    %c0_i32_0 = arith.constant 0 : i32
    return %1, %c0_i32, %arg2 : i32, i32, i32
  }
  func.func @transform_2(%arg0: i32, %arg1: i32, %arg2: i32) -> (i32, i32, i32) {
    %c1_i32 = arith.constant 1 : i32
    %0 = arith.muli %arg0, %c1_i32 : i32
    %1 = arith.addi %0, %arg1 : i32
    %c0_i32 = arith.constant 0 : i32
    %c0_i32_0 = arith.constant 0 : i32
    return %1, %c0_i32, %arg2 : i32, i32, i32
  }
  func.func @transform_3(%arg0: i32, %arg1: i32, %arg2: i32) -> (i32, i32, i32) {
    %c0_i32 = arith.constant 0 : i32
    %c0_i32_0 = arith.constant 0 : i32
    %c0_i32_1 = arith.constant 0 : i32
    return %arg0, %c0_i32, %c0_i32_0 : i32, i32, i32
  }
}

</mosaic_0001>

<llo_original>
// kernel: tpu_custom_call.1
$region0: #{tpu_custom_call.1}
  #allocation0 [shape = 'u32[]', space=smem, size = 0x4, offset = 0x4, fixed_abs, tag = 'smem constant byte address 0x4 - core index']
  #allocation1 [shape = 'u32[144,128]{1,0:T(1,128)}', space=vmem, size = 0x12000, scoped, tag = 'internal scratch']
  #allocation2 [shape = 'f32[1,4,256]{2,1,0:T(4,128)}', space=vmem, size = 0x1000, scoped, tag = 'scratch operand']
  %s0 = inlined_call_operand.hbm [shape: f32[2,4,256], index: 0, kind: input, shape index: {}]
  %s1 = inlined_call_operand.hbm [shape: f32[2,4,256], index: 1, kind: input, shape index: {}]
  %s2 = inlined_call_operand.hbm [shape: f32[2,1,256], index: 2, kind: input, shape index: {}]
  %s3 = inlined_call_operand.vmem [shape: f32[2,1,1], index: 3, kind: output, shape index: {}]
  %s4 = sld [smem:[#allocation0]]
  $region65: #{tpu_custom_call.1} parent=0
    _
  %s6 = ssub.s32 1, %s4
  %s7 = scalar_select 0, %s6, %s4
  $region1: #{tpu_custom_call.1} parent=0
    #allocation3 [shape = 'u8[8192]{0}', space=vmem, size = 0x2000, scoped, tag = 'input window, operand 0']
    #allocation4 [shape = 's32[2]{0}', space=sflag, size = 0x8, scoped, tag = 'scoped memory for tpu_custom_call.1']
    #allocation5 [shape = 'u8[8192]{0}', space=vmem, size = 0x2000, scoped, tag = 'input window, operand 1']
    #allocation6 [shape = 's32[2]{0}', space=sflag, size = 0x8, scoped, tag = 'scoped memory for tpu_custom_call.1']
    #allocation7 [shape = 'u8[2048]{0}', space=vmem, size = 0x800, scoped, tag = 'input window, operand 2']
    %8 = vsyncpa [#allocation4], 0
    %s9 = scalar_lea.sflag [#allocation4], 1
    %10 = vsyncpa %s9, 0
    %11 = vsyncpa [#allocation6], 0
    %s12 = scalar_lea.sflag [#allocation6], 1
    %13 = vsyncpa %s12, 0
    loop: start=0, step=1, limit=4
    $region2: #{tpu_custom_call.1} parent=1 // loop_pre_header
      _
    $region3: #{tpu_custom_call.1} parent=1 // loop_header
      %s15 = sphi 0, %s19
      %p16 = scmp.ge.s32.totalorder %s15, 4
      %s22 = sphi 0, %s41
      %s23 = sphi 0, %s37
      %s24 = sphi 0, %s33
      %s25 = sphi 0, %s22
      %s26 = sphi 0, %s23
      %s27 = sphi 0, %s24
      %s28 = sphi 0, %s25
      %s29 = sphi 0, %s26
      %s30 = sphi 0, %s27
      %s48 = sphi 0, %s50
      %s51 = sphi 0, %s48
      %s52 = sphi 0, %s51
      %s68 = sphi 0, %s52
      %s78 = sphi 0, %s80
      %s81 = sphi 0, %s78
      %s82 = sphi 0, %s81
      %s98 = sphi 0, %s82
      %s108 = sphi 0, %s110
      %s111 = sphi 0, %s108
      %s112 = sphi 0, %s111
      %s128 = sphi 0, %s112
      %s134 = sphi 0, %s136
      %s137 = sphi 0, %s134
      %s138 = sphi 0, %s137
      %s154 = sphi 0, %s138
    $region4: #{tpu_custom_call.1} parent=1 // loop_header_branch
      %18 = sbr.rel (%p16) target = $region8
    $region5: #{tpu_custom_call.1} parent=1 // loop_body
      %s20 = ssub.s32 %s15, 1
      %s21 = ssub.s32 %s15, 2
      %s31 = sadd.s32 1, %s24
      %p32 = scmp.ge.s32.totalorder %s31, 1
      %s33 = scalar_select %p32, 0, %s31
      %s34 = sadd.s32 1, %s23
      %s35 = scalar_select %p32, %s34, %s23
      %p36 = scmp.ge.s32.totalorder %s35, 1
      %s37 = scalar_select %p36, 0, %s35
      %s38 = sadd.s32 1, %s22
      %s39 = scalar_select %p36, %s38, %s22
      %p40 = scmp.ge.s32.totalorder %s39, 2
      %s41 = scalar_select %p40, 0, %s39
      %s42 = sadd.s32 %s22, %s23
      %s43 = sadd.s32 %s41, %s37
      %s44 = ssub.s32 %s42, %s43
      %s45 = ssub.s32 %s24, %s33
      %s46 = sor.u32 %s44, %s45
      %p47 = scmp.eq.s32.totalorder %s46, 0
      %s49 = sadd.s32 %s48, 1
      %s50 = scalar_select %p47, %s48, %s49
      %p53 = pneg %p47
      %p54 = scmp.eq.s32.totalorder %s15, 1
      %p55 = por %p53, %p54
      %p56 = scmp.ne.s32.totalorder %s48, %s51
      %p57 = scmp.eq.s32.totalorder %s15, 0
      %p58 = por %p56, %p57
      %p59 = scmp.ne.s32.totalorder %s48, %s51
      %p60 = scmp.eq.s32.totalorder %s20, 1
      %p61 = por %p59, %p60
      %p62 = scmp.ne.s32.totalorder %s51, %s52
      %p63 = scmp.eq.s32.totalorder %s20, 0
      %p64 = por %p62, %p63
      %p65 = scmp.ne.s32.totalorder %s51, %s52
      %p66 = scmp.eq.s32.totalorder %s21, 1
      %p67 = por %p65, %p66
      %p69 = scmp.ne.s32.totalorder %s52, %s68
      %p70 = scmp.eq.s32.totalorder %s21, 0
      %p71 = por %p69, %p70
      %s72 = sadd.s32 %s22, %s23
      %s73 = sadd.s32 %s41, %s37
      %s74 = ssub.s32 %s72, %s73
      %s75 = ssub.s32 %s24, %s33
      %s76 = sor.u32 %s74, %s75
      %p77 = scmp.eq.s32.totalorder %s76, 0
      %s79 = sadd.s32 %s78, 1
      %s80 = scalar_select %p77, %s78, %s79
      %p83 = pneg %p77
      %p84 = scmp.eq.s32.totalorder %s15, 1
      %p85 = por %p83, %p84
      %p86 = scmp.ne.s32.totalorder %s78, %s81
      %p87 = scmp.eq.s32.totalorder %s15, 0
      %p88 = por %p86, %p87
      %p89 = scmp.ne.s32.totalorder %s78, %s81
      %p90 = scmp.eq.s32.totalorder %s20, 1
      %p91 = por %p89, %p90
      %p92 = scmp.ne.s32.totalorder %s81, %s82
      %p93 = scmp.eq.s32.totalorder %s20, 0
      %p94 = por %p92, %p93
      %p95 = scmp.ne.s32.totalorder %s81, %s82
      %p96 = scmp.eq.s32.totalorder %s21, 1
      %p97 = por %p95, %p96
      %p99 = scmp.ne.s32.totalorder %s82, %s98
      %p100 = scmp.eq.s32.totalorder %s21, 0
      %p101 = por %p99, %p100
      %s102 = sadd.s32 %s22, %s23
      %s103 = sadd.s32 %s41, %s37
      %s104 = ssub.s32 %s102, %s103
      %s105 = ssub.s32 %s24, %s33
      %s106 = sor.u32 %s104, %s105
      %p107 = scmp.eq.s32.totalorder %s106, 0
      %s109 = sadd.s32 %s108, 1
      %s110 = scalar_select %p107, %s108, %s109
      %p113 = pneg %p107
      %p114 = scmp.eq.s32.totalorder %s15, 1
      %p115 = por %p113, %p114
      %p116 = scmp.ne.s32.totalorder %s108, %s111
      %p117 = scmp.eq.s32.totalorder %s15, 0
      %p118 = por %p116, %p117
      %p119 = scmp.ne.s32.totalorder %s108, %s111
      %p120 = scmp.eq.s32.totalorder %s20, 1
      %p121 = por %p119, %p120
      %p122 = scmp.ne.s32.totalorder %s111, %s112
      %p123 = scmp.eq.s32.totalorder %s20, 0
      %p124 = por %p122, %p123
      %p125 = scmp.ne.s32.totalorder %s111, %s112
      %p126 = scmp.eq.s32.totalorder %s21, 1
      %p127 = por %p125, %p126
      %p129 = scmp.ne.s32.totalorder %s112, %s128
      %p130 = scmp.eq.s32.totalorder %s21, 0
      %p131 = por %p129, %p130
      %s132 = ssub.s32 %s22, %s41
      %p133 = scmp.eq.s32.totalorder %s132, 0
      %s135 = sadd.s32 %s134, 1
      %s136 = scalar_select %p133, %s134, %s135
      %p139 = pneg %p133
      %p140 = scmp.eq.s32.totalorder %s15, 1
      %p141 = por %p139, %p140
      %p142 = scmp.ne.s32.totalorder %s134, %s137
      %p143 = scmp.eq.s32.totalorder %s15, 0
      %p144 = por %p142, %p143
      %p145 = scmp.ne.s32.totalorder %s134, %s137
      %p146 = scmp.eq.s32.totalorder %s20, 1
      %p147 = por %p145, %p146
      %p148 = scmp.ne.s32.totalorder %s137, %s138
      %p149 = scmp.eq.s32.totalorder %s20, 0
      %p150 = por %p148, %p149
      %p151 = scmp.ne.s32.totalorder %s137, %s138
      %p152 = scmp.eq.s32.totalorder %s21, 1
      %p153 = por %p151, %p152
      %p155 = scmp.ne.s32.totalorder %s138, %s154
      %p156 = scmp.eq.s32.totalorder %s21, 0
      %p157 = por %p155, %p156
      %p158 = scmp.le.s32.totalorder 1, %s15
      %p159 = scmp.lt.s32.totalorder %s15, 3
      %p160 = pnand %p158, %p159
      %p161 = pneg %p160
      // Predicated region
      $region9: #{tpu_custom_call.1} parent=5 // pred_check
        _
      $region10: #{tpu_custom_call.1} parent=5 // pred_check_branch
        %163 = sbr.rel (%p160) target = $region12
      $region11: #{tpu_custom_call.1} parent=5 // pred_region
        %s164 = ssub.s32 %s15, 1
      $region12: #{tpu_custom_call.1} parent=5 // pred_fallthru
        _
      %p165 = scmp.lt.s32.totalorder %s15, 2
      // Predicated region
      $region13: #{tpu_custom_call.1} parent=5 // pred_check
        %p166 = pneg %p165
      $region14: #{tpu_custom_call.1} parent=5 // pred_check_branch
        %168 = sbr.rel (%p166) target = $region16
      $region15: #{tpu_custom_call.1} parent=5 // pred_region
        // Predicated region
        $region17: #{tpu_custom_call.1} parent=15 // pred_check
          %p169 = pneg %p58
        $region18: #{tpu_custom_call.1} parent=15 // pred_check_branch
          %171 = sbr.rel (%p169) target = $region20
        $region19: #{tpu_custom_call.1} parent=15 // pred_region
          %s172 = sand.u32 %s48, 1
          %s173 = scalar_lea.sflag [#allocation4], %s172
          %s174 = sand.u32 %s48, 1
          %s175 = smul.addr %s174, 8
          %s176 = scalar_lea.vmem [#allocation3], %s175
          %s177 = sadd.s32 %s22, %s23
          %s178 = smul.u32 2, %s24
          %s180 = ssub.s32 128, 128
          %181 = vsyncadd %s173, %s180
          %s182 = smul.addr %s177, 2
          %s183 = sadd.s32 %s178, %s182
          %s184 = smul.addr %s183, 64
          %s185 = scalar_lea.hbm %s0, %s184
          %s187 = sshll.u32 %s176, 4
          %s188 = int_to_ptr.vmem [resolvable:$true] %s187
          %190 = dma.hbm_to_vmem [thread:$0]  %s185, 128, %s188, %s173
        $region20: #{tpu_custom_call.1} parent=15 // pred_fallthru
          _
        // Predicated region
        $region21: #{tpu_custom_call.1} parent=15 // pred_check
          %p191 = pneg %p88
        $region22: #{tpu_custom_call.1} parent=15 // pred_check_branch
          %193 = sbr.rel (%p191) target = $region24
        $region23: #{tpu_custom_call.1} parent=15 // pred_region
          %s194 = sand.u32 %s15, 1
          %s195 = scalar_lea.sflag [#allocation6], %s194
          %s196 = sand.u32 %s78, 1
          %s197 = smul.addr %s196, 8
          %s198 = scalar_lea.vmem [#allocation5], %s197
          %s199 = sadd.s32 %s22, %s23
          %s200 = smul.u32 2, %s24
          %s202 = ssub.s32 128, 128
          %203 = vsyncadd %s195, %s202
          %s204 = smul.addr %s199, 2
          %s205 = sadd.s32 %s200, %s204
          %s206 = smul.addr %s205, 64
          %s207 = scalar_lea.hbm %s1, %s206
          %s209 = sshll.u32 %s198, 4
          %s210 = int_to_ptr.vmem [resolvable:$true] %s209
          %212 = dma.hbm_to_vmem [thread:$0]  %s207, 128, %s210, %s195
        $region24: #{tpu_custom_call.1} parent=15 // pred_fallthru
          _
        // Predicated region
        $region25: #{tpu_custom_call.1} parent=15 // pred_check
          %p213 = pneg %p118
        $region26: #{tpu_custom_call.1} parent=15 // pred_check_branch
          %215 = sbr.rel (%p213) target = $region28
        $region27: #{tpu_custom_call.1} parent=15 // pred_region
          %s216 = sand.u32 %s15, 1
          %s217 = scalar_lea.sflag [#allocation6], %s216
          %s218 = sand.u32 %s108, 1
          %s219 = smul.addr %s218, 2
          %s220 = scalar_lea.vmem [#allocation7], %s219
          %s221 = sadd.s32 %s22, %s23
          %s222 = smul.u32 2, %s24
          %s224 = ssub.s32 32, 32
          %225 = vsyncadd %s217, %s224
          %s226 = smul.addr %s221, 2
          %s227 = sadd.s32 %s222, %s226
          %s228 = smul.addr %s227, 16
          %s229 = scalar_lea.hbm %s2, %s228
          %s231 = sshll.u32 %s220, 4
          %s232 = int_to_ptr.vmem [resolvable:$true] %s231
          %234 = dma.hbm_to_vmem [thread:$0]  %s229, 32, %s232, %s217
        $region28: #{tpu_custom_call.1} parent=15 // pred_fallthru
          _
      $region16: #{tpu_custom_call.1} parent=5 // pred_fallthru
        _
      %p235 = scmp.le.s32.totalorder 1, %s15
      %p236 = scmp.lt.s32.totalorder %s15, 3
      %p237 = pnand %p235, %p236
      %p238 = pneg %p237
      // Predicated region
      $region29: #{tpu_custom_call.1} parent=5 // pred_check
        _
      $region30: #{tpu_custom_call.1} parent=5 // pred_check_branch
        %240 = sbr.rel (%p237) target = $region32
      $region31: #{tpu_custom_call.1} parent=5 // pred_region
        %s241 = ssub.s32 %s15, 1
        %s242 = sand.u32 %s51, 1
        %s243 = scalar_lea.sflag [#allocation4], %s242
        %s244 = sand.u32 %s51, 1
        %s245 = smul.addr %s244, 8
        %s246 = scalar_lea.vmem [#allocation3], %s245
        // Predicated region
        $region33: #{tpu_custom_call.1} parent=31 // pred_check
          %p247 = pneg %p64
        $region34: #{tpu_custom_call.1} parent=31 // pred_check_branch
          %249 = sbr.rel (%p247) target = $region36
        $region35: #{tpu_custom_call.1} parent=31 // pred_region
          %250 = dma.done %s243, 128
        $region36: #{tpu_custom_call.1} parent=31 // pred_fallthru
          _
        %s251 = sand.u32 %s20, 1
        %s252 = scalar_lea.sflag [#allocation6], %s251
        %s253 = sand.u32 %s81, 1
        %s254 = smul.addr %s253, 8
        %s255 = scalar_lea.vmem [#allocation5], %s254
        // Predicated region
        $region37: #{tpu_custom_call.1} parent=31 // pred_check
          %p256 = pneg %p94
        $region38: #{tpu_custom_call.1} parent=31 // pred_check_branch
          %258 = sbr.rel (%p256) target = $region40
        $region39: #{tpu_custom_call.1} parent=31 // pred_region
          %259 = dma.done %s252, 128
        $region40: #{tpu_custom_call.1} parent=31 // pred_fallthru
          _
        %s260 = sand.u32 %s20, 1
        %s261 = scalar_lea.sflag [#allocation6], %s260
        %s262 = sand.u32 %s111, 1
        %s263 = smul.addr %s262, 2
        %s264 = scalar_lea.vmem [#allocation7], %s263
        // Predicated region
        $region41: #{tpu_custom_call.1} parent=31 // pred_check
          %p265 = pneg %p124
        $region42: #{tpu_custom_call.1} parent=31 // pred_check_branch
          %267 = sbr.rel (%p265) target = $region44
        $region43: #{tpu_custom_call.1} parent=31 // pred_region
          %268 = dma.done %s261, 32
        $region44: #{tpu_custom_call.1} parent=31 // pred_fallthru
          _
        %s269 = sand.u32 %s51, 1
        %s270 = scalar_lea.sflag [#allocation4], %s269
        %s271 = sand.u32 %s51, 1
        %s272 = smul.addr %s271, 8
        %s273 = scalar_lea.vmem [#allocation3], %s272
        %p274 = pneg %p64
        %p275 = pneg %p61
        %s276 = sand.u32 %s20, 1
        %s277 = scalar_lea.sflag [#allocation6], %s276
        %s278 = sand.u32 %s81, 1
        %s279 = smul.addr %s278, 8
        %s280 = scalar_lea.vmem [#allocation5], %s279
        %p281 = pneg %p94
        %p282 = pneg %p91
        %s283 = sand.u32 %s20, 1
        %s284 = scalar_lea.sflag [#allocation6], %s283
        %s285 = sand.u32 %s111, 1
        %s286 = smul.addr %s285, 2
        %s287 = scalar_lea.vmem [#allocation7], %s286
        %p288 = pneg %p124
        %p289 = pneg %p121
        %p290 = pneg %p150
        %p291 = pneg %p147
        %p292 = scmp.lt.s32.totalorder %s25, 1
        %s293 = scalar_select %p292, %s25, 1
        %s294 = scalar_lea.vmem %s3, %s293
        %s295 = sadd.s32 %s25, %s26
        %s296 = smul.u32 2, %s27
        %s297 = sadd.s32 %s25, %s26
        %s298 = smul.u32 2, %s27
        %s299 = sadd.s32 %s25, %s26
        %s300 = smul.u32 2, %s27
        %p301 = scmp.lt.s32.totalorder %s25, 1
        %s302 = scalar_select %p301, %s25, 1
        %s303 = scalar_lea.vmem %s3, %s302
        %p304 = scmp.eq.s32.totalorder %s26, 0
        %p305 = scmp.eq.s32.totalorder %s27, 0
        %p306 = pnand %p304, %p305
        %p307 = pneg %p306
        // Predicated region
        $region45: #{tpu_custom_call.1} parent=31 // pred_check
          _
        $region46: #{tpu_custom_call.1} parent=31 // pred_check_branch
          %309 = sbr.rel (%p306) target = $region48
        $region47: #{tpu_custom_call.1} parent=31 // pred_region
          %310 = vst [vmem:[#allocation2] sm:$0xff] 0.0
        $region48: #{tpu_custom_call.1} parent=31 // pred_fallthru
          _
        %v311 = vld [vmem:[%s246] sm:$0xff]
        %v312 = vld [vmem:[%s255] sm:$0xff]
        %v313 = vld [vmem:[%s264] sm:$0x3]
        %v314 = vsub.f32 %v311, %v312
        %v316 = vlaneseq
        %v317 = vshrl.u32 %v316, 7
        %v318 = vsub.s32 0, %v317
        %v319 = vrot.slane %v313, %v318
        %v320 = vlaneseq
        %v321 = vshrl.u32 %v320, 7
        %v322 = vsub.s32 1, %v321
        %v323 = vrot.slane %v313, %v322
        %v324 = vcombine.low %v319, %v323
        %v326 = vmul.f32 %v314, %v324
        %v327 = vand.u32 2147483647, %v326
        %v328 = vld [vmem:[#allocation2] sm:$0xff]
        %v329 = vadd.f32 %v328, %v327
        %330 = vst [vmem:[#allocation2] sm:$0xff] %v329
        // Predicated region
        $region49: #{tpu_custom_call.1} parent=31 // pred_check
          _
        $region50: #{tpu_custom_call.1} parent=31 // pred_check_branch
          %332 = sbr.rel (%p306) target = $region52
        $region51: #{tpu_custom_call.1} parent=31 // pred_region
          %v333 = vld [vmem:[#allocation2] sm:$0xff]
          %v335 = vcombine.high %v333, %v333
          %vm337 = vcmask 1043456
          %v338 = vsel %vm337, %v333, 0.0
          %v339 = vsel %vm337, %v335, 0.0
          %v340 = vadd.f32 %v338, %v339
          %341 = vadd.xlane.f32.xlu0 %v340
          %v342 = vpop.xlane.xlu0 %341
          %v343 = vrot.slane %v342, 4
          %v344 = vadd.f32 %v342, %v343
          %v345 = vrot.slane %v344, 2
          %v346 = vadd.f32 %v344, %v345
          %v347 = vrot.slane %v346, 1
          %v348 = vadd.f32 %v346, %v347
          %s349 = vtos %v348
          %v350 = vstv %s349
          %vm351 = vcmask 0
          %352 = vst.msk [vmem:[%s303] sm:$0x1] %vm351, %v350
        $region52: #{tpu_custom_call.1} parent=31 // pred_fallthru
          _
        %p353 = scmp.lt.s32.totalorder %s25, 1
        %s354 = scalar_select %p353, %s25, 1
        %s355 = scalar_lea.vmem %s3, %s354
        // Predicated region
        $region53: #{tpu_custom_call.1} parent=31 // pred_check
          %p356 = pneg %p147
        $region54: #{tpu_custom_call.1} parent=31 // pred_check_branch
          %358 = sbr.rel (%p356) target = $region56
        $region55: #{tpu_custom_call.1} parent=31 // pred_region
          _
        $region56: #{tpu_custom_call.1} parent=31 // pred_fallthru
          _
      $region32: #{tpu_custom_call.1} parent=5 // pred_fallthru
        _
      %p359 = scmp.le.s32.totalorder 2, %s15
      // Predicated region
      $region57: #{tpu_custom_call.1} parent=5 // pred_check
        %p360 = pneg %p359
      $region58: #{tpu_custom_call.1} parent=5 // pred_check_branch
        %362 = sbr.rel (%p360) target = $region60
      $region59: #{tpu_custom_call.1} parent=5 // pred_region
        %s363 = ssub.s32 %s15, 2
        // Predicated region
        $region61: #{tpu_custom_call.1} parent=59 // pred_check
          %p364 = pneg %p153
        $region62: #{tpu_custom_call.1} parent=59 // pred_check_branch
          %366 = sbr.rel (%p364) target = $region64
        $region63: #{tpu_custom_call.1} parent=59 // pred_region
          %p367 = scmp.lt.s32.totalorder %s28, 1
          %s368 = scalar_select %p367, %s28, 1
          %s369 = scalar_lea.vmem %s3, %s368
        $region64: #{tpu_custom_call.1} parent=59 // pred_fallthru
          _
      $region60: #{tpu_custom_call.1} parent=5 // pred_fallthru
        _
    $region6: #{tpu_custom_call.1} parent=1 // loop_footer
      %s19 = sadd.s32 1, %s15
    $region7: #{tpu_custom_call.1} parent=1 // loop_footer_branch
      %14 = sbr.rel target = $region3
    $region8: #{tpu_custom_call.1} parent=1 // loop_exit
      _
    %370 = vsyncpa [#allocation4], 1
    %s371 = scalar_lea.sflag [#allocation4], 1
    %372 = vsyncpa %s371, 1
    %373 = vsyncpa [#allocation6], 1
    %s374 = scalar_lea.sflag [#allocation6], 1
    %375 = vsyncpa %s374, 1

</llo_original>
